<compile_context>
chip_gen: v7x
topology: tpu7x:2x2x1
jax: 0.10.0
libtpu: 0.0.40
codegen_flags: <defaults>
</compile_context>

<pallas_src>
import jax
import jax.numpy as jnp
from jax.experimental import pallas as pl
from jax.experimental.pallas import tpu as pltpu


def _row_stats_kernel(x_ref, sum_ref, sq_ref):
    # x_ref: (Tb, H*W).  Per-row sum and sum of squares (f32 accumulation).
    x = x_ref[...].astype(jnp.float32)
    sum_ref[...] = jnp.sum(x, axis=1, keepdims=True)
    sq_ref[...] = jnp.sum(x * x, axis=1, keepdims=True)


def _scale_shift_kernel(x_ref, scale_ref, shift_ref, o_ref):
    # y = x * scale + shift, scale/shift are per-row (Tb, 1).
    x = x_ref[...].astype(jnp.float32)
    o_ref[...] = (x * scale_ref[...] + shift_ref[...]).astype(o_ref.dtype)


def _choose_row_block(rows, row_bytes, target_bytes=2 << 20):
    """Pick Tb so the (Tb, H*W) block is ~target_bytes and (8,128)-legal."""
    if rows * row_bytes <= target_bytes:
        return rows  # full extent is always a legal block dim
    tb = max(8, (target_bytes // max(row_bytes, 1)) // 8 * 8)
    return int(min(tb, rows))


def batch_instance_norm(x, gamma, beta, rho, *, eps=1e-5):
    """x: (N, C, H, W); gamma, beta, rho: (1, C, 1, 1)."""
    N, C, H, W = x.shape
    R, L = N * C, H * W
    x2 = x.reshape(R, L)

    Tb = _choose_row_block(R, L * x.dtype.itemsize)
    grid = (pl.cdiv(R, Tb),)

    block_bytes = Tb * L * max(x.dtype.itemsize, 4)
    # 2x double-buffered input + 2x output blocks + headroom; fits v7x 64 MiB.
    vmem_limit = int(min(max(6 * block_bytes + (2 << 20), 16 << 20), 64 << 20))
    cparams = pltpu.CompilerParams(
        dimension_semantics=("parallel",), vmem_limit_bytes=vmem_limit)

    # ---- Pass 1: per-(n, c) row statistics -------------------------------
    row_sum, row_sq = pl.pallas_call(
        _row_stats_kernel,
        out_shape=(jax.ShapeDtypeStruct((R, 1), jnp.float32),
                   jax.ShapeDtypeStruct((R, 1), jnp.float32)),
        grid_spec=pltpu.PrefetchScalarGridSpec(
            num_scalar_prefetch=0,
            grid=grid,
            in_specs=[pl.BlockSpec((Tb, L), lambda i: (i, 0))],
            out_specs=(pl.BlockSpec((Tb, 1), lambda i: (i, 0)),
                       pl.BlockSpec((Tb, 1), lambda i: (i, 0)))),
        compiler_params=cparams,
    )(x2)

    # ---- Tiny scalar math on (N, C) arrays (wrapper-side, negligible) ----
    inv_hw = 1.0 / float(L)
    mean_i = row_sum.reshape(N, C) * inv_hw            # E[x]   per (n, c)
    ex2_i = row_sq.reshape(N, C) * inv_hw              # E[x^2] per (n, c)
    var_i = jnp.maximum(ex2_i - mean_i * mean_i, 0.0)

    mean_b = jnp.mean(mean_i, axis=0)                  # E[x]   per c
    ex2_b = jnp.mean(ex2_i, axis=0)                    # E[x^2] per c
    var_b = jnp.maximum(ex2_b - mean_b * mean_b, 0.0)

    inv_i = jax.lax.rsqrt(var_i + eps)                 # (N, C)
    inv_b = jax.lax.rsqrt(var_b + eps)                 # (C,)

    g = gamma.reshape(C).astype(jnp.float32)
    b = beta.reshape(C).astype(jnp.float32)
    r = jax.nn.sigmoid(rho.reshape(C).astype(jnp.float32))

    # Fold the rho-blended normalization + affine into y = x * scale + shift.
    scale = g * (r * inv_b + (1.0 - r) * inv_i)                          # (N, C)
    shift = b - g * (r * mean_b * inv_b + (1.0 - r) * mean_i * inv_i)    # (N, C)

    # ---- Pass 2: fused normalize + affine --------------------------------
    y2 = pl.pallas_call(
        _scale_shift_kernel,
        out_shape=jax.ShapeDtypeStruct((R, L), x.dtype),
        grid_spec=pltpu.PrefetchScalarGridSpec(
            num_scalar_prefetch=0,
            grid=grid,
            in_specs=[pl.BlockSpec((Tb, L), lambda i: (i, 0)),
                      pl.BlockSpec((Tb, 1), lambda i: (i, 0)),
                      pl.BlockSpec((Tb, 1), lambda i: (i, 0))],
            out_specs=pl.BlockSpec((Tb, L), lambda i: (i, 0))),
        compiler_params=cparams,
    )(x2, scale.reshape(R, 1), shift.reshape(R, 1))

    return y2.reshape(N, C, H, W)


def _reference(x, gamma, beta, rho, eps=1e-5):
    x32 = x.astype(jnp.float32)
    mean_i = jnp.mean(x32, axis=(2, 3), keepdims=True)
    var_i = jnp.mean((x32 - mean_i) ** 2, axis=(2, 3), keepdims=True)
    x_hat_i = (x32 - mean_i) / jnp.sqrt(var_i + eps)
    mean_b = jnp.mean(x32, axis=(0, 2, 3), keepdims=True)
    var_b = jnp.mean((x32 - mean_b) ** 2, axis=(0, 2, 3), keepdims=True)
    x_hat_b = (x32 - mean_b) / jnp.sqrt(var_b + eps)
    r = jax.nn.sigmoid(rho.astype(jnp.float32))
    y = gamma * (r * x_hat_b + (1.0 - r) * x_hat_i) + beta
    return y.astype(x.dtype)


if __name__ == "__main__":
    key = jax.random.PRNGKey(0)
    kx, kr = jax.random.split(key)

    N, C, H, W = 2, 4, 16, 16
    x = jax.random.normal(kx, (N, C, H, W), dtype=jnp.float32)

    # Parameters as in BatchInstanceNorm.__init__: gamma=1, beta=0; rho is an
    # uninitialized nn.Parameter in the reference, so use a deterministic
    # random init to make the blend non-trivial.
    gamma = jnp.ones((1, C, 1, 1), dtype=jnp.float32)
    beta = jnp.zeros((1, C, 1, 1), dtype=jnp.float32)
    rho = jax.random.normal(kr, (1, C, 1, 1), dtype=jnp.float32)

    y = batch_instance_norm(x, gamma, beta, rho, eps=1e-5)
    y = jax.block_until_ready(y)

    y_ref = _reference(x, gamma, beta, rho, eps=1e-5)
    assert y.shape == x.shape and y.dtype == x.dtype
    assert jnp.allclose(y, y_ref, atol=1e-4, rtol=1e-4), (
        float(jnp.max(jnp.abs(y - y_ref))))

    print("KERNEL_OK")
</pallas_src>

<mosaic_0001>
module attributes {stable_mosaic.version = 11 : i64} {
  func.func @_row_stats_kernel(%arg0: i32, %arg1: memref<8x256xf32, #tpu.memory_space<vmem>>, %arg2: memref<8x1xf32, #tpu.memory_space<vmem>>, %arg3: memref<8x1xf32, #tpu.memory_space<vmem>>) attributes {dimension_semantics = [#tpu.dimension_semantics<parallel>], iteration_bounds = array<i64: 1>, scalar_prefetch = 0 : i64, scratch_operands = 0 : i64, tpu.core_type = #tpu.core_type<tc>, window_params = [{transform_indices = @transform_0, window_bounds = array<i64: 8, 256>}, {transform_indices = @transform_1, window_bounds = array<i64: 8, 1>}, {transform_indices = @transform_2, window_bounds = array<i64: 8, 1>}]} {
    %c0 = arith.constant 0 : index
    %c0_0 = arith.constant 0 : index
    %0 = vector.load %arg1[%c0, %c0_0] : memref<8x256xf32, #tpu.memory_space<vmem>>, vector<8x256xf32>
    %cst = arith.constant dense<0.000000e+00> : vector<8xf32>
    %1 = vector.multi_reduction <add>, %0, %cst [1] : vector<8x256xf32> to vector<8xf32>
    %2 = vector.shape_cast %1 : vector<8xf32> to vector<8x1xf32>
    %c0_1 = arith.constant 0 : index
    %c0_2 = arith.constant 0 : index
    %3 = vector.load %arg2[%c0_1, %c0_2] : memref<8x1xf32, #tpu.memory_space<vmem>>, vector<8x1xf32>
    tpu.vector_store %arg2[%c0_1, %c0_2], %2 {strides = array<i32>} : memref<8x1xf32, #tpu.memory_space<vmem>>, vector<8x1xf32>,
    %4 = arith.mulf %0, %0 : vector<8x256xf32>
    %cst_3 = arith.constant dense<0.000000e+00> : vector<8xf32>
    %5 = vector.multi_reduction <add>, %4, %cst_3 [1] : vector<8x256xf32> to vector<8xf32>
    %6 = vector.shape_cast %5 : vector<8xf32> to vector<8x1xf32>
    %c0_4 = arith.constant 0 : index
    %c0_5 = arith.constant 0 : index
    %7 = vector.load %arg3[%c0_4, %c0_5] : memref<8x1xf32, #tpu.memory_space<vmem>>, vector<8x1xf32>
    tpu.vector_store %arg3[%c0_4, %c0_5], %6 {strides = array<i32>} : memref<8x1xf32, #tpu.memory_space<vmem>>, vector<8x1xf32>,
    return
  }
  func.func @transform_0(%arg0: i32) -> (i32, i32) {
    %c0_i32 = arith.constant 0 : i32
    %c0_i32_0 = arith.constant 0 : i32
    return %arg0, %c0_i32 : i32, i32
  }
  func.func @transform_1(%arg0: i32) -> (i32, i32) {
    %c0_i32 = arith.constant 0 : i32
    %c0_i32_0 = arith.constant 0 : i32
    return %arg0, %c0_i32 : i32, i32
  }
  func.func @transform_2(%arg0: i32) -> (i32, i32) {
    %c0_i32 = arith.constant 0 : i32
    %c0_i32_0 = arith.constant 0 : i32
    return %arg0, %c0_i32 : i32, i32
  }
}

</mosaic_0001>

<llo_original>
// kernel: tpu_custom_call.1
$region0: #{tpu_custom_call.1}
  #allocation0 [shape = 'u32[]', space=smem, size = 0x4, offset = 0x4, fixed_abs, tag = 'smem constant byte address 0x4 - core index']
  #allocation1 [shape = 'u32[144,128]{1,0:T(1,128)}', space=vmem, size = 0x12000, scoped, tag = 'internal scratch']
  %s0 = inlined_call_operand.hbm [shape: f32[8,256], index: 0, kind: input, shape index: {}]
  %s1 = inlined_call_operand.vmem [shape: f32[8,1], index: 1, kind: output, shape index: {0}]
  %s2 = inlined_call_operand.vmem [shape: f32[8,1], index: 2, kind: output, shape index: {1}]
  %3 = xla_tuple %s1, %s2
  %s4 = sld [smem:[#allocation0]]
  $region26: #{tpu_custom_call.1} parent=0
    _
  %s6 = ssub.s32 1, %s4
  %s7 = scalar_select 0, %s6, %s4
  $region1: #{tpu_custom_call.1} parent=0
    #allocation2 [shape = 'u8[8192]{0}', space=vmem, size = 0x2000, scoped, tag = 'input window, operand 0, single buffered']
    #allocation3 [shape = 's32[1]{0}', space=sflag, size = 0x4, scoped, tag = 'scoped memory for tpu_custom_call.1']
    %8 = vsyncpa [#allocation3], 0
    // Predicated region
    $region2: #{tpu_custom_call.1} parent=1 // pred_check
      _
    $region3: #{tpu_custom_call.1} parent=1 // pred_check_branch
      %10 = sbr.rel (0) target = $region5
    $region4: #{tpu_custom_call.1} parent=1 // pred_region
      %s12 = ssub.s32 256, 256
      %13 = vsyncadd [#allocation3], %s12
      %s15 = sshll.u32 [#allocation2], 4
      %s16 = int_to_ptr.vmem [resolvable:$true] %s15
      %18 = dma.hbm_to_vmem [thread:$0]  %s0, 256, %s16, [#allocation3]
    $region5: #{tpu_custom_call.1} parent=1 // pred_fallthru
      _
    // Predicated region
    $region6: #{tpu_custom_call.1} parent=1 // pred_check
      _
    $region7: #{tpu_custom_call.1} parent=1 // pred_check_branch
      %20 = sbr.rel (0) target = $region9
    $region8: #{tpu_custom_call.1} parent=1 // pred_region
      %21 = dma.done [#allocation3], 256
    $region9: #{tpu_custom_call.1} parent=1 // pred_fallthru
      _
    %v22 = vld [vmem:[#allocation2] sm:$0xff]
    %v23 = vld [vmem:[#allocation2 + $0x8] sm:$0xff]
    %v24 = vadd.f32 %v22, %v23
    %25 = vadd.xlane.f32.xlu0 %v24
    %v26 = vpop.xlane.xlu0 %25
    %vm27 = vcmask 7168
    %28 = vst.msk [vmem:[%s1] sm:$0xff] %vm27, %v26
    %v29 = vmul.f32 %v22, %v22
    %v30 = vmul.f32 %v23, %v23
    %v31 = vadd.f32 %v29, %v30
    %32 = vadd.xlane.f32.xlu0 %v31
    %v33 = vpop.xlane.xlu0 %32
    %34 = vst.msk [vmem:[%s2] sm:$0xff] %vm27, %v33
    // Predicated region
    $region10: #{tpu_custom_call.1} parent=1 // pred_check
      _
    $region11: #{tpu_custom_call.1} parent=1 // pred_check_branch
      %36 = sbr.rel (0) target = $region13
    $region12: #{tpu_custom_call.1} parent=1 // pred_region
      _
    $region13: #{tpu_custom_call.1} parent=1 // pred_fallthru
      _
    // Predicated region
    $region14: #{tpu_custom_call.1} parent=1 // pred_check
      _
    $region15: #{tpu_custom_call.1} parent=1 // pred_check_branch
      %38 = sbr.rel (0) target = $region17
    $region16: #{tpu_custom_call.1} parent=1 // pred_region
      _
    $region17: #{tpu_custom_call.1} parent=1 // pred_fallthru
      _
    // Predicated region
    $region18: #{tpu_custom_call.1} parent=1 // pred_check
      _
    $region19: #{tpu_custom_call.1} parent=1 // pred_check_branch
      %40 = sbr.rel (0) target = $region21
    $region20: #{tpu_custom_call.1} parent=1 // pred_region
      _
    $region21: #{tpu_custom_call.1} parent=1 // pred_fallthru
      _
    // Predicated region
    $region22: #{tpu_custom_call.1} parent=1 // pred_check
      _
    $region23: #{tpu_custom_call.1} parent=1 // pred_check_branch
      %42 = sbr.rel (0) target = $region25
    $region24: #{tpu_custom_call.1} parent=1 // pred_region
      _
    $region25: #{tpu_custom_call.1} parent=1 // pred_fallthru
      _
    %43 = vsyncpa [#allocation3], 1

</llo_original>
